<compile_context>
chip_gen: v7x
topology: tpu7x:2x2x1
jax: 0.10.0
libtpu: 0.0.40
codegen_flags: <defaults>
</compile_context>

<pallas_src>
import math

import jax
import jax.numpy as jnp
from jax.experimental import pallas as pl
from jax.experimental.pallas import tpu as pltpu

_LANE = 128


def _round_up(v, m):
    return ((v + m - 1) // m) * m


def _largest_divisor_leq(n, k):
    k = max(1, min(int(k), int(n)))
    while n % k:
        k -= 1
    return k


def _graphsn_kernel(a_ref, x_ref, dcorr_ref, w1_ref, b1_ref, w2_ref, b2_ref,
                    w3_ref, b3_ref, o_ref):
    """One grid step processes TB whole graphs (block index = batch tile)."""
    a = a_ref[...]                        # (TB, N, N)   compute dtype
    x = x_ref[...]                        # (TB, N, Fp)  compute dtype

    # Graph aggregation on the MXU with f32 accumulation. The eps-scaled
    # diagonal is a rank-1 correction instead of a materialized A':
    #   (A' X)_i = (A X)_i + (eps - 1) * A_ii * X_i
    h = jnp.einsum("bij,bjf->bif", a, x,
                   preferred_element_type=jnp.float32)        # (TB, N, Fp) f32
    h = h + dcorr_ref[...] * x.astype(jnp.float32)            # VPU, f32

    tb, n, fp = h.shape
    h = h.reshape(tb * n, fp)             # flatten graphs -> one big MLP matmul

    mm_dtype = w1_ref.dtype               # bf16 or f32 MXU operands

    def linear_relu(hh, w_ref, b_ref):
        y = jnp.dot(hh.astype(mm_dtype), w_ref[...],
                    preferred_element_type=jnp.float32) + b_ref[...]
        return jnp.maximum(y, 0.0)        # bias + ReLU in f32 (v5e-safe)

    h = linear_relu(h, w1_ref, b1_ref)    # Linear1 (+ Dropout=id) + ReLU
    h = linear_relu(h, w2_ref, b2_ref)    # Linear2 (+ Dropout=id) + ReLU
    h = linear_relu(h, w3_ref, b3_ref)    # final Linear + ReLU

    o_ref[...] = h.reshape(o_ref.shape).astype(o_ref.dtype)


def graphsn_forward(A, X, params, *, tb=8, compute_dtype=jnp.float32):
    """A: [B, N, N], X: [B, N, Fin] -> [B, N, H] float32."""
    B, N, _ = A.shape
    Fin = X.shape[-1]
    H = params["w1"].shape[-1]

    Fp = _round_up(Fin, _LANE)            # lane-dense feature width
    Hp = _round_up(H, _LANE)              # lane-dense hidden width
    TB = _largest_divisor_leq(B, tb)      # graphs per grid step

    f32 = jnp.float32
    eps = params["eps"].astype(f32)[0]

    # Padded, dtype-cast operands. Zero padding is exact: padded weight
    # rows/cols and padded biases are zero, so padded output columns stay zero
    # through every ReLU and are sliced away at the end.
    Ap = A.astype(compute_dtype)
    Xp = jnp.pad(X, ((0, 0), (0, 0), (0, Fp - Fin))).astype(compute_dtype)
    dcorr = ((eps - 1.0)
             * jnp.einsum("bii->bi", A).astype(f32))[..., None]   # (B, N, 1)

    W1 = jnp.pad(params["w1"], ((0, Fp - Fin), (0, Hp - H))).astype(compute_dtype)
    W2 = jnp.pad(params["w2"], ((0, Hp - H), (0, Hp - H))).astype(compute_dtype)
    W3 = jnp.pad(params["w3"], ((0, Hp - H), (0, Hp - H))).astype(compute_dtype)
    b1 = jnp.pad(params["b1"], (0, Hp - H)).reshape(1, Hp).astype(f32)
    b2 = jnp.pad(params["b2"], (0, Hp - H)).reshape(1, Hp).astype(f32)
    b3 = jnp.pad(params["b3"], (0, Hp - H)).reshape(1, Hp).astype(f32)

    grid_spec = pltpu.PrefetchScalarGridSpec(
        num_scalar_prefetch=0,
        grid=(B // TB,),
        in_specs=[
            pl.BlockSpec((TB, N, N), lambda g: (g, 0, 0)),    # A
            pl.BlockSpec((TB, N, Fp), lambda g: (g, 0, 0)),   # X (lane-padded)
            pl.BlockSpec((TB, N, 1), lambda g: (g, 0, 0)),    # (eps-1)*diag(A)
            pl.BlockSpec((Fp, Hp), lambda g: (0, 0)),         # W1
            pl.BlockSpec((1, Hp), lambda g: (0, 0)),          # b1
            pl.BlockSpec((Hp, Hp), lambda g: (0, 0)),         # W2
            pl.BlockSpec((1, Hp), lambda g: (0, 0)),          # b2
            pl.BlockSpec((Hp, Hp), lambda g: (0, 0)),         # W3
            pl.BlockSpec((1, Hp), lambda g: (0, 0)),          # b3
        ],
        out_specs=pl.BlockSpec((TB, N, Hp), lambda g: (g, 0, 0)),
    )

    itemsize = jnp.dtype(compute_dtype).itemsize
    flops = 2 * B * N * (N * Fp + Fp * Hp + 2 * Hp * Hp)
    bytes_accessed = (B * N * N * itemsize                     # A
                      + B * N * Fp * itemsize                  # X
                      + B * N * 4                              # diag correction
                      + (Fp * Hp + 2 * Hp * Hp) * itemsize     # weights
                      + 3 * Hp * 4                             # biases
                      + B * N * Hp * 4)                        # output
    cost = pl.CostEstimate(flops=flops, transcendentals=0,
                           bytes_accessed=bytes_accessed)

    out = pl.pallas_call(
        _graphsn_kernel,
        out_shape=jax.ShapeDtypeStruct((B, N, Hp), jnp.float32),
        grid_spec=grid_spec,
        compiler_params=pltpu.CompilerParams(
            dimension_semantics=("parallel",)),
        cost_estimate=cost,
    )(Ap, Xp, dcorr, W1, b1, W2, b2, W3, b3)

    return out[..., :H]


def init_params(key, input_dim, hidden_dim):
    """Deterministic PyTorch-style Linear init (uniform +-1/sqrt(fan_in))."""
    ks = jax.random.split(key, 6)

    def linear_init(kw, kb, fan_in, fan_out):
        bound = 1.0 / math.sqrt(fan_in)
        w = jax.random.uniform(kw, (fan_in, fan_out), jnp.float32, -bound, bound)
        b = jax.random.uniform(kb, (fan_out,), jnp.float32, -bound, bound)
        return w, b

    w1, b1 = linear_init(ks[0], ks[1], input_dim, hidden_dim)
    w2, b2 = linear_init(ks[2], ks[3], hidden_dim, hidden_dim)
    w3, b3 = linear_init(ks[4], ks[5], hidden_dim, hidden_dim)
    eps = jnp.array([0.1 / math.sqrt(1.0)], dtype=jnp.float32)  # reset_parameters
    return {"w1": w1, "b1": b1, "w2": w2, "b2": b2,
            "w3": w3, "b3": b3, "eps": eps}


def _reference(A, X, p):
    """Pure-JAX reference for sanity checking."""
    N = A.shape[1]
    eps = p["eps"][0]
    eye = jnp.eye(N, dtype=A.dtype)[None]
    diag = jnp.einsum("bii->bi", A)
    A_mod = eye * (eps * diag)[:, :, None] + (1.0 - eye) * A
    h = A_mod @ X
    h = jax.nn.relu(h @ p["w1"] + p["b1"])
    h = jax.nn.relu(h @ p["w2"] + p["b2"])
    h = jax.nn.relu(h @ p["w3"] + p["b3"])
    return h


if __name__ == "__main__":
    key = jax.random.PRNGKey(0)
    k_a, k_x, k_p = jax.random.split(key, 3)

    B, N, input_dim, hidden_dim = 8, 16, 32, 32
    A = jax.random.uniform(k_a, (B, N, N), jnp.float32)
    A = 0.5 * (A + jnp.swapaxes(A, 1, 2))          # symmetric adjacency
    X = jax.random.normal(k_x, (B, N, input_dim), jnp.float32)

    params = init_params(k_p, input_dim, hidden_dim)
    ref = _reference(A, X, params)

    # f32 MXU operands: tight check vs reference.
    out = jax.block_until_ready(
        graphsn_forward(A, X, params, tb=4, compute_dtype=jnp.float32))
    assert out.shape == (B, N, hidden_dim)
    assert jnp.allclose(out, ref, atol=1e-4, rtol=1e-4), "f32 mismatch vs reference"

    # bf16 MXU operands (v6e/v7x fast path): looser tolerance.
    out_bf16 = jax.block_until_ready(
        graphsn_forward(A, X, params, tb=4, compute_dtype=jnp.bfloat16))
    assert out_bf16.shape == (B, N, hidden_dim)
    assert jnp.allclose(out_bf16, ref, atol=5e-2, rtol=5e-2), "bf16 mismatch vs reference"

    print("KERNEL_OK")
</pallas_src>

<mosaic_0001>
module attributes {stable_mosaic.version = 11 : i64} {
  func.func @_graphsn_kernel(%arg0: i32, %arg1: memref<4x16x16xf32, #tpu.memory_space<vmem>>, %arg2: memref<4x16x128xf32, #tpu.memory_space<vmem>>, %arg3: memref<4x16x1xf32, #tpu.memory_space<vmem>>, %arg4: memref<128x128xf32, #tpu.memory_space<vmem>>, %arg5: memref<1x128xf32, #tpu.memory_space<vmem>>, %arg6: memref<128x128xf32, #tpu.memory_space<vmem>>, %arg7: memref<1x128xf32, #tpu.memory_space<vmem>>, %arg8: memref<128x128xf32, #tpu.memory_space<vmem>>, %arg9: memref<1x128xf32, #tpu.memory_space<vmem>>, %arg10: memref<4x16x128xf32, #tpu.memory_space<vmem>>) attributes {dimension_semantics = [#tpu.dimension_semantics<parallel>], iteration_bounds = array<i64: 2>, scalar_prefetch = 0 : i64, scratch_operands = 0 : i64, tpu.core_type = #tpu.core_type<tc>, window_params = [{transform_indices = @transform_0, window_bounds = array<i64: 4, 16, 16>}, {transform_indices = @transform_1, window_bounds = array<i64: 4, 16, 128>}, {transform_indices = @transform_2, window_bounds = array<i64: 4, 16, 1>}, {pipeline_mode = #tpu.pipeline_mode<synchronous>, transform_indices = @transform_3, window_bounds = array<i64: 128, 128>}, {pipeline_mode = #tpu.pipeline_mode<synchronous>, transform_indices = @transform_4, window_bounds = array<i64: 1, 128>}, {pipeline_mode = #tpu.pipeline_mode<synchronous>, transform_indices = @transform_5, window_bounds = array<i64: 128, 128>}, {pipeline_mode = #tpu.pipeline_mode<synchronous>, transform_indices = @transform_6, window_bounds = array<i64: 1, 128>}, {pipeline_mode = #tpu.pipeline_mode<synchronous>, transform_indices = @transform_7, window_bounds = array<i64: 128, 128>}, {pipeline_mode = #tpu.pipeline_mode<synchronous>, transform_indices = @transform_8, window_bounds = array<i64: 1, 128>}, {transform_indices = @transform_9, window_bounds = array<i64: 4, 16, 128>}]} {
    %c0 = arith.constant 0 : index
    %c0_0 = arith.constant 0 : index
    %c0_1 = arith.constant 0 : index
    %0 = vector.load %arg1[%c0, %c0_0, %c0_1] : memref<4x16x16xf32, #tpu.memory_space<vmem>>, vector<4x16x16xf32>
    %c0_2 = arith.constant 0 : index
    %c0_3 = arith.constant 0 : index
    %c0_4 = arith.constant 0 : index
    %1 = vector.load %arg2[%c0_2, %c0_3, %c0_4] : memref<4x16x128xf32, #tpu.memory_space<vmem>>, vector<4x16x128xf32>
    "tpu.trace_start"() <{level = 10 : i32, message = "bij,bjf->bif"}> : () -> ()
    %cst = arith.constant dense<0.000000e+00> : vector<4x16x128xf32>
    %2 = tpu.matmul %0, %1, %cst {dimension_numbers = #tpu.dot_dimension_numbers<[2], [1], [1], [2], [0, 0, 0, 1, 1, 2], [0], [0]>} : vector<4x16x16xf32>, vector<4x16x128xf32>, vector<4x16x128xf32> -> vector<4x16x128xf32>
    "tpu.trace_stop"() : () -> ()
    %c0_5 = arith.constant 0 : index
    %c0_6 = arith.constant 0 : index
    %c0_7 = arith.constant 0 : index
    %3 = vector.load %arg3[%c0_5, %c0_6, %c0_7] : memref<4x16x1xf32, #tpu.memory_space<vmem>>, vector<4x16x1xf32>
    %4 = vector.broadcast %3 : vector<4x16x1xf32> to vector<4x16x128xf32>
    %5 = arith.mulf %4, %1 : vector<4x16x128xf32>
    %6 = arith.addf %2, %5 : vector<4x16x128xf32>
    %7 = vector.shape_cast %6 : vector<4x16x128xf32> to vector<64x128xf32>
    %c0_8 = arith.constant 0 : index
    %c0_9 = arith.constant 0 : index
    %8 = vector.load %arg4[%c0_8, %c0_9] : memref<128x128xf32, #tpu.memory_space<vmem>>, vector<128x128xf32>
    %cst_10 = arith.constant dense<0.000000e+00> : vector<64x128xf32>
    %9 = tpu.matmul %7, %8, %cst_10 {dimension_numbers = #tpu.dot_dimension_numbers<[1], [0], [0], [1], [0, 0, 1, 1], [], []>} : vector<64x128xf32>, vector<128x128xf32>, vector<64x128xf32> -> vector<64x128xf32>
    %c0_11 = arith.constant 0 : index
    %c0_12 = arith.constant 0 : index
    %10 = vector.load %arg5[%c0_11, %c0_12] : memref<1x128xf32, #tpu.memory_space<vmem>>, vector<1x128xf32>
    %11 = vector.broadcast %10 : vector<1x128xf32> to vector<64x128xf32>
    %12 = arith.addf %9, %11 : vector<64x128xf32>
    %cst_13 = arith.constant 0.000000e+00 : f32
    %13 = vector.broadcast %cst_13 : f32 to vector<64x128xf32>
    %14 = arith.maximumf %12, %13 : vector<64x128xf32>
    %c0_14 = arith.constant 0 : index
    %c0_15 = arith.constant 0 : index
    %15 = vector.load %arg6[%c0_14, %c0_15] : memref<128x128xf32, #tpu.memory_space<vmem>>, vector<128x128xf32>
    %cst_16 = arith.constant dense<0.000000e+00> : vector<64x128xf32>
    %16 = tpu.matmul %14, %15, %cst_16 {dimension_numbers = #tpu.dot_dimension_numbers<[1], [0], [0], [1], [0, 0, 1, 1], [], []>} : vector<64x128xf32>, vector<128x128xf32>, vector<64x128xf32> -> vector<64x128xf32>
    %c0_17 = arith.constant 0 : index
    %c0_18 = arith.constant 0 : index
    %17 = vector.load %arg7[%c0_17, %c0_18] : memref<1x128xf32, #tpu.memory_space<vmem>>, vector<1x128xf32>
    %18 = vector.broadcast %17 : vector<1x128xf32> to vector<64x128xf32>
    %19 = arith.addf %16, %18 : vector<64x128xf32>
    %cst_19 = arith.constant 0.000000e+00 : f32
    %20 = vector.broadcast %cst_19 : f32 to vector<64x128xf32>
    %21 = arith.maximumf %19, %20 : vector<64x128xf32>
    %c0_20 = arith.constant 0 : index
    %c0_21 = arith.constant 0 : index
    %22 = vector.load %arg8[%c0_20, %c0_21] : memref<128x128xf32, #tpu.memory_space<vmem>>, vector<128x128xf32>
    %cst_22 = arith.constant dense<0.000000e+00> : vector<64x128xf32>
    %23 = tpu.matmul %21, %22, %cst_22 {dimension_numbers = #tpu.dot_dimension_numbers<[1], [0], [0], [1], [0, 0, 1, 1], [], []>} : vector<64x128xf32>, vector<128x128xf32>, vector<64x128xf32> -> vector<64x128xf32>
    %c0_23 = arith.constant 0 : index
    %c0_24 = arith.constant 0 : index
    %24 = vector.load %arg9[%c0_23, %c0_24] : memref<1x128xf32, #tpu.memory_space<vmem>>, vector<1x128xf32>
    %25 = vector.broadcast %24 : vector<1x128xf32> to vector<64x128xf32>
    %26 = arith.addf %23, %25 : vector<64x128xf32>
    %cst_25 = arith.constant 0.000000e+00 : f32
    %27 = vector.broadcast %cst_25 : f32 to vector<64x128xf32>
    %28 = arith.maximumf %26, %27 : vector<64x128xf32>
    %29 = vector.shape_cast %28 : vector<64x128xf32> to vector<4x16x128xf32>
    %c0_26 = arith.constant 0 : index
    %c0_27 = arith.constant 0 : index
    %c0_28 = arith.constant 0 : index
    %30 = vector.load %arg10[%c0_26, %c0_27, %c0_28] : memref<4x16x128xf32, #tpu.memory_space<vmem>>, vector<4x16x128xf32>
    tpu.vector_store %arg10[%c0_26, %c0_27, %c0_28], %29 {strides = array<i32>} : memref<4x16x128xf32, #tpu.memory_space<vmem>>, vector<4x16x128xf32>,
    return
  }
  func.func @transform_0(%arg0: i32) -> (i32, i32, i32) {
    %c0_i32 = arith.constant 0 : i32
    %c0_i32_0 = arith.constant 0 : i32
    %c0_i32_1 = arith.constant 0 : i32
    return %arg0, %c0_i32, %c0_i32_0 : i32, i32, i32
  }
  func.func @transform_1(%arg0: i32) -> (i32, i32, i32) {
    %c0_i32 = arith.constant 0 : i32
    %c0_i32_0 = arith.constant 0 : i32
    %c0_i32_1 = arith.constant 0 : i32
    return %arg0, %c0_i32, %c0_i32_0 : i32, i32, i32
  }
  func.func @transform_2(%arg0: i32) -> (i32, i32, i32) {
    %c0_i32 = arith.constant 0 : i32
    %c0_i32_0 = arith.constant 0 : i32
    %c0_i32_1 = arith.constant 0 : i32
    return %arg0, %c0_i32, %c0_i32_0 : i32, i32, i32
  }
  func.func @transform_3(%arg0: i32) -> (i32, i32) {
    %c0_i32 = arith.constant 0 : i32
    %c0_i32_0 = arith.constant 0 : i32
    %c0_i32_1 = arith.constant 0 : i32
    return %c0_i32, %c0_i32_0 : i32, i32
  }
  func.func @transform_4(%arg0: i32) -> (i32, i32) {
    %c0_i32 = arith.constant 0 : i32
    %c0_i32_0 = arith.constant 0 : i32
    %c0_i32_1 = arith.constant 0 : i32
    return %c0_i32, %c0_i32_0 : i32, i32
  }
  func.func @transform_5(%arg0: i32) -> (i32, i32) {
    %c0_i32 = arith.constant 0 : i32
    %c0_i32_0 = arith.constant 0 : i32
    %c0_i32_1 = arith.constant 0 : i32
    return %c0_i32, %c0_i32_0 : i32, i32
  }
  func.func @transform_6(%arg0: i32) -> (i32, i32) {
    %c0_i32 = arith.constant 0 : i32
    %c0_i32_0 = arith.constant 0 : i32
    %c0_i32_1 = arith.constant 0 : i32
    return %c0_i32, %c0_i32_0 : i32, i32
  }
  func.func @transform_7(%arg0: i32) -> (i32, i32) {
    %c0_i32 = arith.constant 0 : i32
    %c0_i32_0 = arith.constant 0 : i32
    %c0_i32_1 = arith.constant 0 : i32
    return %c0_i32, %c0_i32_0 : i32, i32
  }
  func.func @transform_8(%arg0: i32) -> (i32, i32) {
    %c0_i32 = arith.constant 0 : i32
    %c0_i32_0 = arith.constant 0 : i32
    %c0_i32_1 = arith.constant 0 : i32
    return %c0_i32, %c0_i32_0 : i32, i32
  }
  func.func @transform_9(%arg0: i32) -> (i32, i32, i32) {
    %c0_i32 = arith.constant 0 : i32
    %c0_i32_0 = arith.constant 0 : i32
    %c0_i32_1 = arith.constant 0 : i32
    return %arg0, %c0_i32, %c0_i32_0 : i32, i32, i32
  }
}

</mosaic_0001>

<llo_original>
// kernel: tpu_custom_call.1
$region0: #{tpu_custom_call.1}
  #allocation0 [shape = 'u32[]', space=smem, size = 0x4, offset = 0x4, fixed_abs, tag = 'smem constant byte address 0x4 - core index']
  #allocation1 [shape = 'u32[144,128]{1,0:T(1,128)}', space=vmem, size = 0x12000, scoped, tag = 'internal scratch']
  %s0 = inlined_call_operand.vmem [shape: f32[8,16,16], index: 0, kind: input, shape index: {}]
  %s1 = inlined_call_operand.hbm [shape: f32[8,16,128], index: 1, kind: input, shape index: {}]
  %s2 = inlined_call_operand.vmem [shape: f32[8,16,1], index: 2, kind: input, shape index: {}]
  %s3 = inlined_call_operand.hbm [shape: f32[128,128], index: 3, kind: input, shape index: {}]
  %s4 = inlined_call_operand.vmem [shape: f32[1,128], index: 4, kind: input, shape index: {}]
  %s5 = inlined_call_operand.hbm [shape: f32[128,128], index: 5, kind: input, shape index: {}]
  %s6 = inlined_call_operand.vmem [shape: f32[1,128], index: 6, kind: input, shape index: {}]
  %s7 = inlined_call_operand.hbm [shape: f32[128,128], index: 7, kind: input, shape index: {}]
  %s8 = inlined_call_operand.vmem [shape: f32[1,128], index: 8, kind: input, shape index: {}]
  %s9 = inlined_call_operand.hbm [shape: f32[8,16,128], index: 9, kind: output, shape index: {}]
  %s10 = sld [smem:[#allocation0]]
  $region85: #{tpu_custom_call.1} parent=0
    _
  %s12 = ssub.s32 1, %s10
  %s13 = scalar_select 0, %s12, %s10
  $region1: #{tpu_custom_call.1} parent=0
    #allocation2 [shape = 'u8[65536]{0}', space=vmem, size = 0x10000, scoped, tag = 'input window, operand 1']
    #allocation3 [shape = 's32[2]{0}', space=sflag, size = 0x8, scoped, tag = 'scoped memory for tpu_custom_call.1']
    #allocation4 [shape = 's32[2]{0}', space=sflag, size = 0x8, scoped, tag = 'scoped memory for tpu_custom_call.1']
    #allocation5 [shape = 'u8[65536]{0}', space=vmem, size = 0x10000, scoped, tag = 'input window, operand 3, single buffered']
    #allocation6 [shape = 's32[1]{0}', space=sflag, size = 0x4, scoped, tag = 'scoped memory for tpu_custom_call.1']
    #allocation7 [shape = 'u8[65536]{0}', space=vmem, size = 0x10000, scoped, tag = 'input window, operand 5, single buffered']
    #allocation8 [shape = 'u8[65536]{0}', space=vmem, size = 0x10000, scoped, tag = 'input window, operand 7, single buffered']
    #allocation9 [shape = 's32[1]{0}', space=sflag, size = 0x4, scoped, tag = 'scoped memory for tpu_custom_call.1']
    #allocation10 [shape = 'u8[65536]{0}', space=vmem, size = 0x10000, scoped, tag = 'output window, operand 0']
    %14 = vsyncpa [#allocation3], 0
    %s15 = scalar_lea.sflag [#allocation3], 1
    %16 = vsyncpa %s15, 0
    %17 = vsyncpa [#allocation6], 0
    %18 = vsyncpa [#allocation9], 0
    %19 = vsyncpa [#allocation4], 0
    %s20 = scalar_lea.sflag [#allocation4], 1
    %21 = vsyncpa %s20, 0
    loop: start=0, step=1, limit=4
    $region2: #{tpu_custom_call.1} parent=1 // loop_pre_header
      _
    $region3: #{tpu_custom_call.1} parent=1 // loop_header
      %s23 = sphi 0, %s27
      %p24 = scmp.ge.s32.totalorder %s23, 4
      %s33 = sphi 0, %s35
      %s36 = sphi 0, %s33
      %s37 = sphi 0, %s36
      %s53 = sphi 0, %s37
      %s59 = sphi 0, %s61
      %s62 = sphi 0, %s59
      %s63 = sphi 0, %s62
      %s79 = sphi 0, %s63
      %s85 = sphi 0, %s87
      %s88 = sphi 0, %s85
      %s89 = sphi 0, %s88
      %s105 = sphi 0, %s89
      %s109 = sphi 0, %s109
      %s111 = sphi 0, %s109
      %s112 = sphi 0, %s111
      %s126 = sphi 0, %s112
      %s130 = sphi 0, %s130
      %s132 = sphi 0, %s130
      %s133 = sphi 0, %s132
      %s147 = sphi 0, %s133
      %s151 = sphi 0, %s151
      %s153 = sphi 0, %s151
      %s154 = sphi 0, %s153
      %s168 = sphi 0, %s154
      %s172 = sphi 0, %s172
      %s174 = sphi 0, %s172
      %s175 = sphi 0, %s174
      %s189 = sphi 0, %s175
      %s193 = sphi 0, %s193
      %s195 = sphi 0, %s193
      %s196 = sphi 0, %s195
      %s210 = sphi 0, %s196
      %s214 = sphi 0, %s214
      %s216 = sphi 0, %s214
      %s217 = sphi 0, %s216
      %s231 = sphi 0, %s217
      %s237 = sphi 0, %s239
      %s240 = sphi 0, %s237
      %s241 = sphi 0, %s240
      %s257 = sphi 0, %s241
    $region4: #{tpu_custom_call.1} parent=1 // loop_header_branch
      %26 = sbr.rel (%p24) target = $region8
    $region5: #{tpu_custom_call.1} parent=1 // loop_body
      %s28 = ssub.s32 %s23, 1
      %s29 = ssub.s32 %s23, 2
      %s30 = sadd.s32 %s23, 1
      %s31 = ssub.s32 %s23, %s30
      %p32 = scmp.eq.s32.totalorder %s31, 0
      %s34 = sadd.s32 %s33, 1
      %s35 = scalar_select %p32, %s33, %s34
      %p38 = pneg %p32
      %p39 = scmp.eq.s32.totalorder %s23, 1
      %p40 = por %p38, %p39
      %p41 = scmp.ne.s32.totalorder %s33, %s36
      %p42 = scmp.eq.s32.totalorder %s23, 0
      %p43 = por %p41, %p42
      %p44 = scmp.ne.s32.totalorder %s33, %s36
      %p45 = scmp.eq.s32.totalorder %s28, 1
      %p46 = por %p44, %p45
      %p47 = scmp.ne.s32.totalorder %s36, %s37
      %p48 = scmp.eq.s32.totalorder %s28, 0
      %p49 = por %p47, %p48
      %p50 = scmp.ne.s32.totalorder %s36, %s37
      %p51 = scmp.eq.s32.totalorder %s29, 1
      %p52 = por %p50, %p51
      %p54 = scmp.ne.s32.totalorder %s37, %s53
      %p55 = scmp.eq.s32.totalorder %s29, 0
      %p56 = por %p54, %p55
      %s57 = ssub.s32 %s23, %s30
      %p58 = scmp.eq.s32.totalorder %s57, 0
      %s60 = sadd.s32 %s59, 1
      %s61 = scalar_select %p58, %s59, %s60
      %p64 = pneg %p58
      %p65 = scmp.eq.s32.totalorder %s23, 1
      %p66 = por %p64, %p65
      %p67 = scmp.ne.s32.totalorder %s59, %s62
      %p68 = scmp.eq.s32.totalorder %s23, 0
      %p69 = por %p67, %p68
      %p70 = scmp.ne.s32.totalorder %s59, %s62
      %p71 = scmp.eq.s32.totalorder %s28, 1
      %p72 = por %p70, %p71
      %p73 = scmp.ne.s32.totalorder %s62, %s63
      %p74 = scmp.eq.s32.totalorder %s28, 0
      %p75 = por %p73, %p74
      %p76 = scmp.ne.s32.totalorder %s62, %s63
      %p77 = scmp.eq.s32.totalorder %s29, 1
      %p78 = por %p76, %p77
      %p80 = scmp.ne.s32.totalorder %s63, %s79
      %p81 = scmp.eq.s32.totalorder %s29, 0
      %p82 = por %p80, %p81
      %s83 = ssub.s32 %s23, %s30
      %p84 = scmp.eq.s32.totalorder %s83, 0
      %s86 = sadd.s32 %s85, 1
      %s87 = scalar_select %p84, %s85, %s86
      %p90 = pneg %p84
      %p91 = scmp.eq.s32.totalorder %s23, 1
      %p92 = por %p90, %p91
      %p93 = scmp.ne.s32.totalorder %s85, %s88
      %p94 = scmp.eq.s32.totalorder %s23, 0
      %p95 = por %p93, %p94
      %p96 = scmp.ne.s32.totalorder %s85, %s88
      %p97 = scmp.eq.s32.totalorder %s28, 1
      %p98 = por %p96, %p97
      %p99 = scmp.ne.s32.totalorder %s88, %s89
      %p100 = scmp.eq.s32.totalorder %s28, 0
      %p101 = por %p99, %p100
      %p102 = scmp.ne.s32.totalorder %s88, %s89
      %p103 = scmp.eq.s32.totalorder %s29, 1
      %p104 = por %p102, %p103
      %p106 = scmp.ne.s32.totalorder %s89, %s105
      %p107 = scmp.eq.s32.totalorder %s29, 0
      %p108 = por %p106, %p107
      %s110 = sadd.s32 %s109, 1
      %p113 = scmp.eq.s32.totalorder %s23, 1
      %p114 = scmp.ne.s32.totalorder %s109, %s111
      %p115 = scmp.eq.s32.totalorder %s23, 0
      %p116 = por %p114, %p115
      %p117 = scmp.ne.s32.totalorder %s109, %s111
      %p118 = scmp.eq.s32.totalorder %s28, 1
      %p119 = por %p117, %p118
      %p120 = scmp.ne.s32.totalorder %s111, %s112
      %p121 = scmp.eq.s32.totalorder %s28, 0
      %p122 = por %p120, %p121
      %p123 = scmp.ne.s32.totalorder %s111, %s112
      %p124 = scmp.eq.s32.totalorder %s29, 1
      %p125 = por %p123, %p124
      %p127 = scmp.ne.s32.totalorder %s112, %s126
      %p128 = scmp.eq.s32.totalorder %s29, 0
      %p129 = por %p127, %p128
      %s131 = sadd.s32 %s130, 1
      %p134 = scmp.eq.s32.totalorder %s23, 1
      %p135 = scmp.ne.s32.totalorder %s130, %s132
      %p136 = scmp.eq.s32.totalorder %s23, 0
      %p137 = por %p135, %p136
      %p138 = scmp.ne.s32.totalorder %s130, %s132
      %p139 = scmp.eq.s32.totalorder %s28, 1
      %p140 = por %p138, %p139
      %p141 = scmp.ne.s32.totalorder %s132, %s133
      %p142 = scmp.eq.s32.totalorder %s28, 0
      %p143 = por %p141, %p142
      %p144 = scmp.ne.s32.totalorder %s132, %s133
      %p145 = scmp.eq.s32.totalorder %s29, 1
      %p146 = por %p144, %p145
      %p148 = scmp.ne.s32.totalorder %s133, %s147
      %p149 = scmp.eq.s32.totalorder %s29, 0
      %p150 = por %p148, %p149
      %s152 = sadd.s32 %s151, 1
      %p155 = scmp.eq.s32.totalorder %s23, 1
      %p156 = scmp.ne.s32.totalorder %s151, %s153
      %p157 = scmp.eq.s32.totalorder %s23, 0
      %p158 = por %p156, %p157
      %p159 = scmp.ne.s32.totalorder %s151, %s153
      %p160 = scmp.eq.s32.totalorder %s28, 1
      %p161 = por %p159, %p160
      %p162 = scmp.ne.s32.totalorder %s153, %s154
      %p163 = scmp.eq.s32.totalorder %s28, 0
      %p164 = por %p162, %p163
      %p165 = scmp.ne.s32.totalorder %s153, %s154
      %p166 = scmp.eq.s32.totalorder %s29, 1
      %p167 = por %p165, %p166
      %p169 = scmp.ne.s32.totalorder %s154, %s168
      %p170 = scmp.eq.s32.totalorder %s29, 0
      %p171 = por %p169, %p170
      %s173 = sadd.s32 %s172, 1
      %p176 = scmp.eq.s32.totalorder %s23, 1
      %p177 = scmp.ne.s32.totalorder %s172, %s174
      %p178 = scmp.eq.s32.totalorder %s23, 0
      %p179 = por %p177, %p178
      %p180 = scmp.ne.s32.totalorder %s172, %s174
      %p181 = scmp.eq.s32.totalorder %s28, 1
      %p182 = por %p180, %p181
      %p183 = scmp.ne.s32.totalorder %s174, %s175
      %p184 = scmp.eq.s32.totalorder %s28, 0
      %p185 = por %p183, %p184
      %p186 = scmp.ne.s32.totalorder %s174, %s175
      %p187 = scmp.eq.s32.totalorder %s29, 1
      %p188 = por %p186, %p187
      %p190 = scmp.ne.s32.totalorder %s175, %s189
      %p191 = scmp.eq.s32.totalorder %s29, 0
      %p192 = por %p190, %p191
      %s194 = sadd.s32 %s193, 1
      %p197 = scmp.eq.s32.totalorder %s23, 1
      %p198 = scmp.ne.s32.totalorder %s193, %s195
      %p199 = scmp.eq.s32.totalorder %s23, 0
      %p200 = por %p198, %p199
      %p201 = scmp.ne.s32.totalorder %s193, %s195
      %p202 = scmp.eq.s32.totalorder %s28, 1
      %p203 = por %p201, %p202
      %p204 = scmp.ne.s32.totalorder %s195, %s196
      %p205 = scmp.eq.s32.totalorder %s28, 0
      %p206 = por %p204, %p205
      %p207 = scmp.ne.s32.totalorder %s195, %s196
      %p208 = scmp.eq.s32.totalorder %s29, 1
      %p209 = por %p207, %p208
      %p211 = scmp.ne.s32.totalorder %s196, %s210
      %p212 = scmp.eq.s32.totalorder %s29, 0
      %p213 = por %p211, %p212
      %s215 = sadd.s32 %s214, 1
      %p218 = scmp.eq.s32.totalorder %s23, 1
      %p219 = scmp.ne.s32.totalorder %s214, %s216
      %p220 = scmp.eq.s32.totalorder %s23, 0
      %p221 = por %p219, %p220
      %p222 = scmp.ne.s32.totalorder %s214, %s216
      %p223 = scmp.eq.s32.totalorder %s28, 1
      %p224 = por %p222, %p223
      %p225 = scmp.ne.s32.totalorder %s216, %s217
      %p226 = scmp.eq.s32.totalorder %s28, 0
      %p227 = por %p225, %p226
      %p228 = scmp.ne.s32.totalorder %s216, %s217
      %p229 = scmp.eq.s32.totalorder %s29, 1
      %p230 = por %p228, %p229
      %p232 = scmp.ne.s32.totalorder %s217, %s231
      %p233 = scmp.eq.s32.totalorder %s29, 0
      %p234 = por %p232, %p233
      %s235 = ssub.s32 %s23, %s30
      %p236 = scmp.eq.s32.totalorder %s235, 0
      %s238 = sadd.s32 %s237, 1
      %s239 = scalar_select %p236, %s237, %s238
      %p242 = pneg %p236
      %p243 = scmp.eq.s32.totalorder %s23, 1
      %p244 = por %p242, %p243
      %p245 = scmp.ne.s32.totalorder %s237, %s240
      %p246 = scmp.eq.s32.totalorder %s23, 0
      %p247 = por %p245, %p246
      %p248 = scmp.ne.s32.totalorder %s237, %s240
      %p249 = scmp.eq.s32.totalorder %s28, 1
      %p250 = por %p248, %p249
      %p251 = scmp.ne.s32.totalorder %s240, %s241
      %p252 = scmp.eq.s32.totalorder %s28, 0
      %p253 = por %p251, %p252
      %p254 = scmp.ne.s32.totalorder %s240, %s241
      %p255 = scmp.eq.s32.totalorder %s29, 1
      %p256 = por %p254, %p255
      %p258 = scmp.ne.s32.totalorder %s241, %s257
      %p259 = scmp.eq.s32.totalorder %s29, 0
      %p260 = por %p258, %p259
      %p261 = scmp.le.s32.totalorder 1, %s23
      %p262 = scmp.lt.s32.totalorder %s23, 3
      %p263 = pnand %p261, %p262
      %p264 = pneg %p263
      // Predicated region
      $region9: #{tpu_custom_call.1} parent=5 // pred_check
        _
      $region10: #{tpu_custom_call.1} parent=5 // pred_check_branch
        %266 = sbr.rel (%p263) target = $region12
      $region11: #{tpu_custom_call.1} parent=5 // pred_region
        %s267 = ssub.s32 %s23, 1
        // Predicated region
        $region13: #{tpu_custom_call.1} parent=11 // pred_check
          %p268 = pneg %p122
        $region14: #{tpu_custom_call.1} parent=11 // pred_check_branch
          %270 = sbr.rel (%p268) target = $region16
        $region15: #{tpu_custom_call.1} parent=11 // pred_region
          %s272 = ssub.s32 2048, 2048
          %273 = vsyncadd [#allocation6], %s272
          %s274 = sshll.u32 [#allocation5], 4
          %s275 = int_to_ptr.vmem [resolvable:$true] %s274
          %280 = dma.hbm_to_vmem [thread:$0]  %s3, 2048, %s275, [#allocation6], 128, 128, 8
        $region16: #{tpu_custom_call.1} parent=11 // pred_fallthru
          _
        // Predicated region
        $region17: #{tpu_custom_call.1} parent=11 // pred_check
          %p281 = pneg %p143
        $region18: #{tpu_custom_call.1} parent=11 // pred_check_branch
          %283 = sbr.rel (%p281) target = $region20
        $region19: #{tpu_custom_call.1} parent=11 // pred_region
          _
        $region20: #{tpu_custom_call.1} parent=11 // pred_fallthru
          _
        // Predicated region
        $region21: #{tpu_custom_call.1} parent=11 // pred_check
          %p284 = pneg %p164
        $region22: #{tpu_custom_call.1} parent=11 // pred_check_branch
          %286 = sbr.rel (%p284) target = $region24
        $region23: #{tpu_custom_call.1} parent=11 // pred_region
          %s288 = ssub.s32 2048, 2048
          %289 = vsyncadd [#allocation6], %s288
          %s290 = sshll.u32 [#allocation7], 4
          %s291 = int_to_ptr.vmem [resolvable:$true] %s290
          %296 = dma.hbm_to_vmem [thread:$0]  %s5, 2048, %s291, [#allocation6], 128, 128, 8
        $region24: #{tpu_custom_call.1} parent=11 // pred_fallthru
          _
        // Predicated region
        $region25: #{tpu_custom_call.1} parent=11 // pred_check
          %p297 = pneg %p185
        $region26: #{tpu_custom_call.1} parent=11 // pred_check_branch
          %299 = sbr.rel (%p297) target = $region28
        $region27: #{tpu_custom_call.1} parent=11 // pred_region
          _
        $region28: #{tpu_custom_call.1} parent=11 // pred_fallthru
          _
        // Predicated region
        $region29: #{tpu_custom_call.1} parent=11 // pred_check
          %p300 = pneg %p206
        $region30: #{tpu_custom_call.1} parent=11 // pred_check_branch
          %302 = sbr.rel (%p300) target = $region32
        $region31: #{tpu_custom_call.1} parent=11 // pred_region
          %s304 = ssub.s32 2048, 2048
          %305 = vsyncadd [#allocation9], %s304
          %s306 = sshll.u32 [#allocation8], 4
          %s307 = int_to_ptr.vmem [resolvable:$true] %s306
          %312 = dma.hbm_to_vmem [thread:$0]  %s7, 2048, %s307, [#allocation9], 128, 128, 8
        $region32: #{tpu_custom_call.1} parent=11 // pred_fallthru
          _
        // Predicated region
        $region33: #{tpu_custom_call.1} parent=11 // pred_check
          %p313 = pneg %p227
        $region34: #{tpu_custom_call.1} parent=11 // pred_check_branch
          %315 = sbr.rel (%p313) target = $region36
        $region35: #{tpu_custom_call.1} parent=11 // pred_region
          _
        $region36: #{tpu_custom_call.1} parent=11 // pred_fallthru
          _
      $region12: #{tpu_custom_call.1} parent=5 // pred_fallthru
        _
      %p316 = scmp.lt.s32.totalorder %s23, 2
      // Predicated region
      $region37: #{tpu_custom_call.1} parent=5 // pred_check
        %p317 = pneg %p316
      $region38: #{tpu_custom_call.1} parent=5 // pred_check_branch
        %319 = sbr.rel (%p317) target = $region40
      $region39: #{tpu_custom_call.1} parent=5 // pred_region
        // Predicated region
        $region41: #{tpu_custom_call.1} parent=39 // pred_check
          %p320 = pneg %p43
        $region42: #{tpu_custom_call.1} parent=39 // pred_check_branch
          %322 = sbr.rel (%p320) target = $region44
        $region43: #{tpu_custom_call.1} parent=39 // pred_region
          %s323 = smul.u32 4, %s23
          %p324 = scmp.lt.s32.totalorder %s323, 7
          %s325 = scalar_select %p324, %s323, 7
          %s326 = smul.addr %s325, 2
          %s327 = smul.addr %s326, 8
          %s328 = scalar_lea.vmem %s0, %s327
          %s329 = smul.u32 4, %s23
        $region44: #{tpu_custom_call.1} parent=39 // pred_fallthru
          _
        // Predicated region
        $region45: #{tpu_custom_call.1} parent=39 // pred_check
          %p330 = pneg %p69
        $region46: #{tpu_custom_call.1} parent=39 // pred_check_branch
          %332 = sbr.rel (%p330) target = $region48
        $region47: #{tpu_custom_call.1} parent=39 // pred_region
          %s333 = sand.u32 %s59, 1
          %s334 = scalar_lea.sflag [#allocation3], %s333
          %s335 = sand.u32 %s59, 1
          %s336 = smul.addr %s335, 64
          %s337 = scalar_lea.vmem [#allocation2], %s336
          %s338 = smul.u32 4, %s23
          %s340 = ssub.s32 1024, 1024
          %341 = vsyncadd %s334, %s340
          %s342 = smul.addr %s338, 2
          %s343 = smul.addr %s342, 128
          %s344 = scalar_lea.hbm %s1, %s343
          %s345 = sshll.u32 %s337, 4
          %s346 = int_to_ptr.vmem [resolvable:$true] %s345
          %351 = dma.hbm_to_vmem [thread:$0]  %s344, 1024, %s346, %s334, 128, 128, 8
        $region48: #{tpu_custom_call.1} parent=39 // pred_fallthru
          _
        // Predicated region
        $region49: #{tpu_custom_call.1} parent=39 // pred_check
          %p352 = pneg %p95
        $region50: #{tpu_custom_call.1} parent=39 // pred_check_branch
          %354 = sbr.rel (%p352) target = $region52
        $region51: #{tpu_custom_call.1} parent=39 // pred_region
          %s355 = smul.u32 4, %s23
          %p356 = scmp.lt.s32.totalorder %s355, 7
          %s357 = scalar_select %p356, %s355, 7
          %s358 = smul.addr %s357, 2
          %s359 = smul.addr %s358, 8
          %s360 = scalar_lea.vmem %s2, %s359
          %s361 = smul.u32 4, %s23
        $region52: #{tpu_custom_call.1} parent=39 // pred_fallthru
          _
      $region40: #{tpu_custom_call.1} parent=5 // pred_fallthru
        _
      %p362 = scmp.le.s32.totalorder 1, %s23
      %p363 = scmp.lt.s32.totalorder %s23, 3
      %p364 = pnand %p362, %p363
      %p365 = pneg %p364
      // Predicated region
      $region53: #{tpu_custom_call.1} parent=5 // pred_check
        _
      $region54: #{tpu_custom_call.1} parent=5 // pred_check_branch
        %367 = sbr.rel (%p364) target = $region56
      $region55: #{tpu_custom_call.1} parent=5 // pred_region
        %s368 = ssub.s32 %s23, 1
        %s369 = sand.u32 %s62, 1
        %s370 = scalar_lea.sflag [#allocation3], %s369
        %s371 = sand.u32 %s62, 1
        %s372 = smul.addr %s371, 64
        %s373 = scalar_lea.vmem [#allocation2], %s372
        // Predicated region
        $region57: #{tpu_custom_call.1} parent=55 // pred_check
          %p374 = pneg %p75
        $region58: #{tpu_custom_call.1} parent=55 // pred_check_branch
          %376 = sbr.rel (%p374) target = $region60
        $region59: #{tpu_custom_call.1} parent=55 // pred_region
          %377 = dma.done %s370, 1024
        $region60: #{tpu_custom_call.1} parent=55 // pred_fallthru
          _
        // Predicated region
        $region61: #{tpu_custom_call.1} parent=55 // pred_check
          %p378 = pneg %p122
        $region62: #{tpu_custom_call.1} parent=55 // pred_check_branch
          %380 = sbr.rel (%p378) target = $region64
        $region63: #{tpu_custom_call.1} parent=55 // pred_region
          %381 = dma.done [#allocation6], 2048
        $region64: #{tpu_custom_call.1} parent=55 // pred_fallthru
          _
        // Predicated region
        $region65: #{tpu_custom_call.1} parent=55 // pred_check
          %p382 = pneg %p164
        $region66: #{tpu_custom_call.1} parent=55 // pred_check_branch
          %384 = sbr.rel (%p382) target = $region68
        $region67: #{tpu_custom_call.1} parent=55 // pred_region
          %385 = dma.done [#allocation6], 2048
        $region68: #{tpu_custom_call.1} parent=55 // pred_fallthru
          _
        // Predicated region
        $region69: #{tpu_custom_call.1} parent=55 // pred_check
          %p386 = pneg %p206
        $region70: #{tpu_custom_call.1} parent=55 // pred_check_branch
          %388 = sbr.rel (%p386) target = $region72
        $region71: #{tpu_custom_call.1} parent=55 // pred_region
          %389 = dma.done [#allocation9], 2048
        $region72: #{tpu_custom_call.1} parent=55 // pred_fallthru
          _
        %s390 = smul.u32 4, %s28
        %p391 = scmp.lt.s32.totalorder %s390, 7
        %s392 = scalar_select %p391, %s390, 7
        %s393 = smul.addr %s392, 2
        %s394 = smul.addr %s393, 8
        %s395 = scalar_lea.vmem %s0, %s394
        %p396 = pneg %p49
        %p397 = pneg %p46
        %s398 = sand.u32 %s62, 1
        %s399 = scalar_lea.sflag [#allocation3], %s398
        %s400 = sand.u32 %s62, 1
        %s401 = smul.addr %s400, 64
        %s402 = scalar_lea.vmem [#allocation2], %s401
        %p403 = pneg %p75
        %p404 = pneg %p72
        %s405 = smul.u32 4, %s28
        %p406 = scmp.lt.s32.totalorder %s405, 7
        %s407 = scalar_select %p406, %s405, 7
        %s408 = smul.addr %s407, 2
        %s409 = smul.addr %s408, 8
        %s410 = scalar_lea.vmem %s2, %s409
        %p411 = pneg %p101
        %p412 = pneg %p98
        %p413 = pneg %p122
        %p414 = pneg %p119
        %p415 = pneg %p143
        %p416 = pneg %p140
        %p417 = pneg %p164
        %p418 = pneg %p161
        %p419 = pneg %p185
        %p420 = pneg %p182
        %p421 = pneg %p206
        %p422 = pneg %p203
        %p423 = pneg %p227
        %p424 = pneg %p224
        %p425 = pneg %p253
        %p426 = pneg %p250
        %s427 = sand.u32 %s240, 1
        %s428 = scalar_lea.sflag [#allocation4], %s427
        %s429 = sand.u32 %s240, 1
        %s430 = smul.addr %s429, 64
        %s431 = scalar_lea.vmem [#allocation10], %s430
        %s432 = smul.u32 4, %s28
        %p433 = scmp.lt.s32.totalorder %s432, 7
        %s434 = scalar_select %p433, %s432, 7
        %s435 = smul.addr %s434, 2
        %s436 = smul.addr %s435, 8
        %s437 = scalar_lea.vmem %s0, %s436
        %s438 = smul.u32 4, %s28
        %s439 = smul.u32 4, %s28
        %s440 = smul.u32 4, %s28
        %p441 = scmp.lt.s32.totalorder %s440, 7
        %s442 = scalar_select %p441, %s440, 7
        %s443 = smul.addr %s442, 2
        %s444 = smul.addr %s443, 8
        %s445 = scalar_lea.vmem %s2, %s444
        %s446 = smul.u32 4, %s28
        %s447 = smul.u32 4, %s28
        %v448 = vld [vmem:[%s437] sm:$0xff]
        %v449 = vld [vmem:[%s437 + $0x8] sm:$0xff]
        %v450 = vld [vmem:[%s437 + $0x10] sm:$0xff]
        %v451 = vld [vmem:[%s437 + $0x18] sm:$0xff]
        %v452 = vld [vmem:[%s437 + $0x20] sm:$0xff]
        %v453 = vld [vmem:[%s437 + $0x28] sm:$0xff]
        %v454 = vld [vmem:[%s437 + $0x30] sm:$0xff]
        %v455 = vld [vmem:[%s437 + $0x38] sm:$0xff]
        %v456 = vld [vmem:[%s373] sm:$0xff]
        %v457 = vld [vmem:[%s373 + $0x8] sm:$0xff]
        %v458 = vld [vmem:[%s373 + $0x10] sm:$0xff]
        %v459 = vld [vmem:[%s373 + $0x18] sm:$0xff]
        %v460 = vld [vmem:[%s373 + $0x20] sm:$0xff]
        %v461 = vld [vmem:[%s373 + $0x28] sm:$0xff]
        %v462 = vld [vmem:[%s373 + $0x30] sm:$0xff]
        %v463 = vld [vmem:[%s373 + $0x38] sm:$0xff]
        %v464 = vld [vmem:[%s445] sm:$0xff]
        %v465 = vld [vmem:[%s445 + $0x8] sm:$0xff]
        %v466 = vld [vmem:[%s445 + $0x10] sm:$0xff]
        %v467 = vld [vmem:[%s445 + $0x18] sm:$0xff]
        %v468 = vld [vmem:[%s445 + $0x20] sm:$0xff]
        %v469 = vld [vmem:[%s445 + $0x28] sm:$0xff]
        %v470 = vld [vmem:[%s445 + $0x30] sm:$0xff]
        %v471 = vld [vmem:[%s445 + $0x38] sm:$0xff]
        %473 = vset.pattern.permute.xlu0 0
        %474 = vperm.xlu0 %473, %v464
        %v475 = vpop.permute.xlu0 %474
        %478 = vset.pattern.permute.xlu0 0
        %479 = vperm.xlu0 %478, %v465
        %v480 = vpop.permute.xlu0 %479
        %483 = vset.pattern.permute.xlu0 0
        %484 = vperm.xlu0 %483, %v466
        %v485 = vpop.permute.xlu0 %484
        %488 = vset.pattern.permute.xlu0 0
        %489 = vperm.xlu0 %488, %v467
        %v490 = vpop.permute.xlu0 %489
        %493 = vset.pattern.permute.xlu0 0
        %494 = vperm.xlu0 %493, %v468
        %v495 = vpop.permute.xlu0 %494
        %498 = vset.pattern.permute.xlu0 0
        %499 = vperm.xlu0 %498, %v469
        %v500 = vpop.permute.xlu0 %499
        %503 = vset.pattern.permute.xlu0 0
        %504 = vperm.xlu0 %503, %v470
        %v505 = vpop.permute.xlu0 %504
        %508 = vset.pattern.permute.xlu0 0
        %509 = vperm.xlu0 %508, %v471
        %v510 = vpop.permute.xlu0 %509
        %v512 = vmul.f32 %v475, %v456
        %v513 = vmul.f32 %v480, %v457
        %v514 = vmul.f32 %v485, %v458
        %v515 = vmul.f32 %v490, %v459
        %v516 = vmul.f32 %v495, %v460
        %v517 = vmul.f32 %v500, %v461
        %v518 = vmul.f32 %v505, %v462
        %v519 = vmul.f32 %v510, %v463
        %vm520 = vcmask 130048
        %v522 = vsel %vm520, %v448, 0
        %v525 = vsel %vm520, %v449, 0
        %527 = vmatprep.subr.mxu0 0.0
        %528 = vmatpush1.msra.mxu0 %v456
        %529 = vmatprep.subr.mxu0 0.0
        %530 = vmatpush1.msra.mxu0 %v457
        %531 = vmatprep.subr.mxu0 0.0
        %532 = vmatpush1.msra.mxu0 0.0
        %533 = vmatprep.subr.mxu0 0.0
        %534 = vmatpush1.msra.mxu0 0.0
        %535 = vmatprep.subr.mxu0 0.0
        %536 = vmatpush1.msra.mxu0 0.0
        %537 = vmatprep.subr.mxu0 0.0
        %538 = vmatpush1.msra.mxu0 0.0
        %539 = vmatprep.subr.mxu0 0.0
        %540 = vmatpush1.msra.mxu0 0.0
        %541 = vmatprep.subr.mxu0 0.0
        %542 = vmatpush1.msra.mxu0 0.0
        %543 = vmatprep.subr.mxu0 0.0
        %544 = vmatpush1.msra.mxu0 0.0
        %545 = vmatprep.subr.mxu0 0.0
        %546 = vmatpush1.msra.mxu0 0.0
        %547 = vmatprep.subr.mxu0 0.0
        %548 = vmatpush1.msra.mxu0 0.0
        %549 = vmatprep.subr.mxu0 0.0
        %550 = vmatpush1.msra.mxu0 0.0
        %551 = vmatprep.subr.mxu0 0.0
        %552 = vmatpush1.msra.mxu0 0.0
        %553 = vmatprep.subr.mxu0 0.0
        %554 = vmatpush1.msra.mxu0 0.0
        %555 = vmatprep.subr.mxu0 0.0
        %556 = vmatpush1.msra.mxu0 0.0
        %557 = vmatprep.subr.mxu0 0.0
        %558 = vmatpush1.msra.mxu0 0.0
        %559 = vmatprep.subr.mxu0 0.0
        %560 = vmatpush1.msra.mxu0 0.0
        %561 = vmatprep.subr.mxu0 0.0
        %562 = vmatpush1.msra.mxu0 0.0
        %563 = vmatprep.subr.mxu0 0.0
        %564 = vmatpush1.msra.mxu0 0.0
        %565 = vmatprep.subr.mxu0 0.0
        %566 = vmatpush1.msra.mxu0 0.0
        %567 = vmatprep.subr.mxu0 0.0
        %568 = vmatpush1.msra.mxu0 0.0
        %569 = vmatprep.subr.mxu0 0.0
        %570 = vmatpush1.msra.mxu0 0.0
        %571 = vmatprep.subr.mxu0 0.0
        %572 = vmatpush1.msra.mxu0 0.0
        %573 = vmatprep.subr.mxu0 0.0
        %574 = vmatpush1.msra.mxu0 0.0
        %575 = vmatprep.subr.mxu0 0.0
        %576 = vmatpush1.msra.mxu0 0.0
        %577 = vmatprep.subr.mxu0 0.0
        %578 = vmatpush1.msra.mxu0 0.0
        %579 = vmatprep.subr.mxu0 0.0
        %580 = vmatpush1.msra.mxu0 0.0
        %581 = vmatprep.subr.mxu0 0.0
        %582 = vmatpush1.msra.mxu0 0.0
        %583 = vmatprep.subr.mxu0 0.0
        %584 = vmatpush1.msra.mxu0 0.0
        %585 = vmatprep.subr.mxu0 0.0
        %586 = vmatpush1.msra.mxu0 0.0
        %587 = vmatprep.subr.mxu0 0.0
        %588 = vmatpush1.msra.mxu0 0.0
        %589 = vmatprep.subr.mxu0 0.0
        %590 = vmatpush1.msra.mxu0 0.0
        %591 = vmatprep.mubr.f32.mxu0 0.0
        %592 = vmatmul.mubr.f32.gmra.mrb[0].mxu0 %v522
        %v593 = vpop.f32.mrb[0].mxu0
        %v594 = vadd.f32 %v512, %v593
        %v595 = vpop.f32.mrb[0].mxu0
        %596 = vmatprep.mubr.f32.mxu0 0.0
        %597 = vmatmul.mubr.f32.gmra.mrb[0].mxu0 %v525
        %v598 = vpop.f32.mrb[0].mxu0
        %v599 = vadd.f32 %v513, %v598
        %v600 = vpop.f32.mrb[0].mxu0
        %601 = vdwg.mxu0
        %v603 = vsel %vm520, %v450, 0
        %v606 = vsel %vm520, %v451, 0
        %608 = vmatprep.subr.mxu0 0.0
        %609 = vmatpush1.msra.mxu0 %v458
        %610 = vmatprep.subr.mxu0 0.0
        %611 = vmatpush1.msra.mxu0 %v459
        %612 = vmatprep.subr.mxu0 0.0
        %613 = vmatpush1.msra.mxu0 0.0
        %614 = vmatprep.subr.mxu0 0.0
        %615 = vmatpush1.msra.mxu0 0.0
        %616 = vmatprep.subr.mxu0 0.0
        %617 = vmatpush1.msra.mxu0 0.0
        %618 = vmatprep.subr.mxu0 0.0
        %619 = vmatpush1.msra.mxu0 0.0
        %620 = vmatprep.subr.mxu0 0.0
        %621 = vmatpush1.msra.mxu0 0.0
        %622 = vmatprep.subr.mxu0 0.0
        %623 = vmatpush1.msra.mxu0 0.0
        %624 = vmatprep.subr.mxu0 0.0
        %625 = vmatpush1.msra.mxu0 0.0
        %626 = vmatprep.subr.mxu0 0.0
        %627 = vmatpush1.msra.mxu0 0.0
        %628 = vmatprep.subr.mxu0 0.0
        %629 = vmatpush1.msra.mxu0 0.0
        %630 = vmatprep.subr.mxu0 0.0
        %631 = vmatpush1.msra.mxu0 0.0
        %632 = vmatprep.subr.mxu0 0.0
        %633 = vmatpush1.msra.mxu0 0.0
        %634 = vmatprep.subr.mxu0 0.0
        %635 = vmatpush1.msra.mxu0 0.0
        %636 = vmatprep.subr.mxu0 0.0
        %637 = vmatpush1.msra.mxu0 0.0
        %638 = vmatprep.subr.mxu0 0.0
        %639 = vmatpush1.msra.mxu0 0.0
        %640 = vmatprep.subr.mxu0 0.0
        %641 = vmatpush1.msra.mxu0 0.0
        %642 = vmatprep.subr.mxu0 0.0
        %643 = vmatpush1.msra.mxu0 0.0
        %644 = vmatprep.subr.mxu0 0.0
        %645 = vmatpush1.msra.mxu0 0.0
        %646 = vmatprep.subr.mxu0 0.0
        %647 = vmatpush1.msra.mxu0 0.0
        %648 = vmatprep.subr.mxu0 0.0
        %649 = vmatpush1.msra.mxu0 0.0
        %650 = vmatprep.subr.mxu0 0.0
        %651 = vmatpush1.msra.mxu0 0.0
        %652 = vmatprep.subr.mxu0 0.0
        %653 = vmatpush1.msra.mxu0 0.0
        %654 = vmatprep.subr.mxu0 0.0
        %655 = vmatpush1.msra.mxu0 0.0
        %656 = vmatprep.subr.mxu0 0.0
        %657 = vmatpush1.msra.mxu0 0.0
        %658 = vmatprep.subr.mxu0 0.0
        %659 = vmatpush1.msra.mxu0 0.0
        %660 = vmatprep.subr.mxu0 0.0
        %661 = vmatpush1.msra.mxu0 0.0
        %662 = vmatprep.subr.mxu0 0.0
        %663 = vmatpush1.msra.mxu0 0.0
        %664 = vmatprep.subr.mxu0 0.0
        %665 = vmatpush1.msra.mxu0 0.0
        %666 = vmatprep.subr.mxu0 0.0
        %667 = vmatpush1.msra.mxu0 0.0
        %668 = vmatprep.subr.mxu0 0.0
        %669 = vmatpush1.msra.mxu0 0.0
        %670 = vmatprep.subr.mxu0 0.0
        %671 = vmatpush1.msra.mxu0 0.0
        %672 = vmatprep.mubr.f32.mxu0 0.0
        %673 = vmatmul.mubr.f32.gmra.mrb[0].mxu0 %v603
        %v674 = vpop.f32.mrb[0].mxu0
        %v675 = vadd.f32 %v514, %v674
        %v676 = vpop.f32.mrb[0].mxu0
        %677 = vmatprep.mubr.f32.mxu0 0.0
        %678 = vmatmul.mubr.f32.gmra.mrb[0].mxu0 %v606
        %v679 = vpop.f32.mrb[0].mxu0
        %v680 = vadd.f32 %v515, %v679
        %v681 = vpop.f32.mrb[0].mxu0
        %682 = vdwg.mxu0
        %v684 = vsel %vm520, %v452, 0
        %v687 = vsel %vm520, %v453, 0
        %689 = vmatprep.subr.mxu0 0.0
        %690 = vmatpush1.msra.mxu0 %v460
        %691 = vmatprep.subr.mxu0 0.0
        %692 = vmatpush1.msra.mxu0 %v461
        %693 = vmatprep.subr.mxu0 0.0
        %694 = vmatpush1.msra.mxu0 0.0
        %695 = vmatprep.subr.mxu0 0.0
        %696 = vmatpush1.msra.mxu0 0.0
        %697 = vmatprep.subr.mxu0 0.0
        %698 = vmatpush1.msra.mxu0 0.0
        %699 = vmatprep.subr.mxu0 0.0
        %700 = vmatpush1.msra.mxu0 0.0
        %701 = vmatprep.subr.mxu0 0.0
        %702 = vmatpush1.msra.mxu0 0.0
        %703 = vmatprep.subr.mxu0 0.0
        %704 = vmatpush1.msra.mxu0 0.0
        %705 = vmatprep.subr.mxu0 0.0
        %706 = vmatpush1.msra.mxu0 0.0
        %707 = vmatprep.subr.mxu0 0.0
        %708 = vmatpush1.msra.mxu0 0.0
        %709 = vmatprep.subr.mxu0 0.0
        %710 = vmatpush1.msra.mxu0 0.0
        %711 = vmatprep.subr.mxu0 0.0
        %712 = vmatpush1.msra.mxu0 0.0
        %713 = vmatprep.subr.mxu0 0.0
        %714 = vmatpush1.msra.mxu0 0.0
        %715 = vmatprep.subr.mxu0 0.0
        %716 = vmatpush1.msra.mxu0 0.0
        %717 = vmatprep.subr.mxu0 0.0
        %718 = vmatpush1.msra.mxu0 0.0
        %719 = vmatprep.subr.mxu0 0.0
        %720 = vmatpush1.msra.mxu0 0.0
        %721 = vmatprep.subr.mxu0 0.0
        %722 = vmatpush1.msra.mxu0 0.0
        %723 = vmatprep.subr.mxu0 0.0
        %724 = vmatpush1.msra.mxu0 0.0
        %725 = vmatprep.subr.mxu0 0.0
        %726 = vmatpush1.msra.mxu0 0.0
        %727 = vmatprep.subr.mxu0 0.0
        %728 = vmatpush1.msra.mxu0 0.0
        %729 = vmatprep.subr.mxu0 0.0
        %730 = vmatpush1.msra.mxu0 0.0
        %731 = vmatprep.subr.mxu0 0.0
        %732 = vmatpush1.msra.mxu0 0.0
        %733 = vmatprep.subr.mxu0 0.0
        %734 = vmatpush1.msra.mxu0 0.0
        %735 = vmatprep.subr.mxu0 0.0
        %736 = vmatpush1.msra.mxu0 0.0
        %737 = vmatprep.subr.mxu0 0.0
        %738 = vmatpush1.msra.mxu0 0.0
        %739 = vmatprep.subr.mxu0 0.0
        %740 = vmatpush1.msra.mxu0 0.0
        %741 = vmatprep.subr.mxu0 0.0
        %742 = vmatpush1.msra.mxu0 0.0
        %743 = vmatprep.subr.mxu0 0.0
        %744 = vmatpush1.msra.mxu0 0.0
        %745 = vmatprep.subr.mxu0 0.0
        %746 = vmatpush1.msra.mxu0 0.0
        %747 = vmatprep.subr.mxu0 0.0
        %748 = vmatpush1.msra.mxu0 0.0
        %749 = vmatprep.subr.mxu0 0.0
        %750 = vmatpush1.msra.mxu0 0.0
        %751 = vmatprep.subr.mxu0 0.0
        %752 = vmatpush1.msra.mxu0 0.0
        %753 = vmatprep.mubr.f32.mxu0 0.0
        %754 = vmatmul.mubr.f32.gmra.mrb[0].mxu0 %v684
        %v755 = vpop.f32.mrb[0].mxu0
        %v756 = vadd.f32 %v516, %v755
        %v757 = vpop.f32.mrb[0].mxu0
        %758 = vmatprep.mubr.f32.mxu0 0.0
        %759 = vmatmul.mubr.f32.gmra.mrb[0].mxu0 %v687
        %v760 = vpop.f32.mrb[0].mxu0
        %v761 = vadd.f32 %v517, %v760
        %v762 = vpop.f32.mrb[0].mxu0
        %763 = vdwg.mxu0
        %v765 = vsel %vm520, %v454, 0
        %v768 = vsel %vm520, %v455, 0
        %770 = vmatprep.subr.mxu0 0.0
        %771 = vmatpush1.msra.mxu0 %v462
        %772 = vmatprep.subr.mxu0 0.0
        %773 = vmatpush1.msra.mxu0 %v463
        %774 = vmatprep.subr.mxu0 0.0
        %775 = vmatpush1.msra.mxu0 0.0
        %776 = vmatprep.subr.mxu0 0.0
        %777 = vmatpush1.msra.mxu0 0.0
        %778 = vmatprep.subr.mxu0 0.0
        %779 = vmatpush1.msra.mxu0 0.0
        %780 = vmatprep.subr.mxu0 0.0
        %781 = vmatpush1.msra.mxu0 0.0
        %782 = vmatprep.subr.mxu0 0.0
        %783 = vmatpush1.msra.mxu0 0.0
        %784 = vmatprep.subr.mxu0 0.0
        %785 = vmatpush1.msra.mxu0 0.0
        %786 = vmatprep.subr.mxu0 0.0
        %787 = vmatpush1.msra.mxu0 0.0
        %788 = vmatprep.subr.mxu0 0.0
        %789 = vmatpush1.msra.mxu0 0.0
        %790 = vmatprep.subr.mxu0 0.0
        %791 = vmatpush1.msra.mxu0 0.0
        %792 = vmatprep.subr.mxu0 0.0
        %793 = vmatpush1.msra.mxu0 0.0
        %794 = vmatprep.subr.mxu0 0.0
        %795 = vmatpush1.msra.mxu0 0.0
        %796 = vmatprep.subr.mxu0 0.0
        %797 = vmatpush1.msra.mxu0 0.0
        %798 = vmatprep.subr.mxu0 0.0
        %799 = vmatpush1.msra.mxu0 0.0
        %800 = vmatprep.subr.mxu0 0.0
        %801 = vmatpush1.msra.mxu0 0.0
        %802 = vmatprep.subr.mxu0 0.0
        %803 = vmatpush1.msra.mxu0 0.0
        %804 = vmatprep.subr.mxu0 0.0
        %805 = vmatpush1.msra.mxu0 0.0
        %806 = vmatprep.subr.mxu0 0.0
        %807 = vmatpush1.msra.mxu0 0.0
        %808 = vmatprep.subr.mxu0 0.0
        %809 = vmatpush1.msra.mxu0 0.0
        %810 = vmatprep.subr.mxu0 0.0
        %811 = vmatpush1.msra.mxu0 0.0
        %812 = vmatprep.subr.mxu0 0.0
        %813 = vmatpush1.msra.mxu0 0.0
        %814 = vmatprep.subr.mxu0 0.0
        %815 = vmatpush1.msra.mxu0 0.0
        %816 = vmatprep.subr.mxu0 0.0
        %817 = vmatpush1.msra.mxu0 0.0
        %818 = vmatprep.subr.mxu0 0.0
        %819 = vmatpush1.msra.mxu0 0.0
        %820 = vmatprep.subr.mxu0 0.0
        %821 = vmatpush1.msra.mxu0 0.0
        %822 = vmatprep.subr.mxu0 0.0
        %823 = vmatpush1.msra.mxu0 0.0
        %824 = vmatprep.subr.mxu0 0.0
        %825 = vmatpush1.msra.mxu0 0.0
        %826 = vmatprep.subr.mxu0 0.0
        %827 = vmatpush1.msra.mxu0 0.0
        %828 = vmatprep.subr.mxu0 0.0
        %829 = vmatpush1.msra.mxu0 0.0
        %830 = vmatprep.subr.mxu0 0.0
        %831 = vmatpush1.msra.mxu0 0.0
        %832 = vmatprep.subr.mxu0 0.0
        %833 = vmatpush1.msra.mxu0 0.0
        %834 = vmatprep.mubr.f32.mxu0 0.0
        %835 = vmatmul.mubr.f32.gmra.mrb[0].mxu0 %v765
        %v836 = vpop.f32.mrb[0].mxu0
        %v837 = vadd.f32 %v518, %v836
        %v838 = vpop.f32.mrb[0].mxu0
        %839 = vmatprep.mubr.f32.mxu0 0.0
        %840 = vmatmul.mubr.f32.gmra.mrb[0].mxu0 %v768
        %v841 = vpop.f32.mrb[0].mxu0
        %v842 = vadd.f32 %v519, %v841
        %v843 = vpop.f32.mrb[0].mxu0
        %844 = vdwg.mxu0
        %v845 = vld [vmem:[#allocation5] sm:$0xff]
        %v846 = vld [vmem:[#allocation5 + $0x8] sm:$0xff]
        %v847 = vld [vmem:[#allocation5 + $0x10] sm:$0xff]
        %v848 = vld [vmem:[#allocation5 + $0x18] sm:$0xff]
        %v849 = vld [vmem:[#allocation5 + $0x20] sm:$0xff]
        %v850 = vld [vmem:[#allocation5 + $0x28] sm:$0xff]
        %v851 = vld [vmem:[#allocation5 + $0x30] sm:$0xff]
        %v852 = vld [vmem:[#allocation5 + $0x38] sm:$0xff]
        %v853 = vld [vmem:[#allocation5 + $0x40] sm:$0xff]
        %v854 = vld [vmem:[#allocation5 + $0x48] sm:$0xff]
        %v855 = vld [vmem:[#allocation5 + $0x50] sm:$0xff]
        %v856 = vld [vmem:[#allocation5 + $0x58] sm:$0xff]
        %v857 = vld [vmem:[#allocation5 + $0x60] sm:$0xff]
        %v858 = vld [vmem:[#allocation5 + $0x68] sm:$0xff]
        %v859 = vld [vmem:[#allocation5 + $0x70] sm:$0xff]
        %v860 = vld [vmem:[#allocation5 + $0x78] sm:$0xff]
        %v861 = vld [vmem:[%s4] sm:$0x1]
        %v863 = vlaneseq
        %v864 = vshrl.u32 %v863, 7
        %v865 = vsub.s32 0, %v864
        %v866 = vrot.slane %v861, %v865
        %868 = vmatprep.subr.mxu0 0.0
        %869 = vmatpush1.msra.mxu0 %v845
        %870 = vmatprep.subr.mxu0 0.0
        %871 = vmatpush1.msra.mxu0 %v846
        %872 = vmatprep.subr.mxu0 0.0
        %873 = vmatpush1.msra.mxu0 %v847
        %874 = vmatprep.subr.mxu0 0.0
        %875 = vmatpush1.msra.mxu0 %v848
        %876 = vmatprep.subr.mxu0 0.0
        %877 = vmatpush1.msra.mxu0 %v849
        %878 = vmatprep.subr.mxu0 0.0
        %879 = vmatpush1.msra.mxu0 %v850
        %880 = vmatprep.subr.mxu0 0.0
        %881 = vmatpush1.msra.mxu0 %v851
        %882 = vmatprep.subr.mxu0 0.0
        %883 = vmatpush1.msra.mxu0 %v852
        %884 = vmatprep.subr.mxu0 0.0
        %885 = vmatpush1.msra.mxu0 %v853
        %886 = vmatprep.subr.mxu0 0.0
        %887 = vmatpush1.msra.mxu0 %v854
        %888 = vmatprep.subr.mxu0 0.0
        %889 = vmatpush1.msra.mxu0 %v855
        %890 = vmatprep.subr.mxu0 0.0
        %891 = vmatpush1.msra.mxu0 %v856
        %892 = vmatprep.subr.mxu0 0.0
        %893 = vmatpush1.msra.mxu0 %v857
        %894 = vmatprep.subr.mxu0 0.0
        %895 = vmatpush1.msra.mxu0 %v858
        %896 = vmatprep.subr.mxu0 0.0
        %897 = vmatpush1.msra.mxu0 %v859
        %898 = vmatprep.subr.mxu0 0.0
        %899 = vmatpush1.msra.mxu0 %v860
        %900 = vmatprep.subr.mxu0 0.0
        %901 = vmatpush1.msra.mxu0 0.0
        %902 = vmatprep.subr.mxu0 0.0
        %903 = vmatpush1.msra.mxu0 0.0
        %904 = vmatprep.subr.mxu0 0.0
        %905 = vmatpush1.msra.mxu0 0.0
        %906 = vmatprep.subr.mxu0 0.0
        %907 = vmatpush1.msra.mxu0 0.0
        %908 = vmatprep.subr.mxu0 0.0
        %909 = vmatpush1.msra.mxu0 0.0
        %910 = vmatprep.subr.mxu0 0.0
        %911 = vmatpush1.msra.mxu0 0.0
        %912 = vmatprep.subr.mxu0 0.0
        %913 = vmatpush1.msra.mxu0 0.0
        %914 = vmatprep.subr.mxu0 0.0
        %915 = vmatpush1.msra.mxu0 0.0
        %916 = vmatprep.subr.mxu0 0.0
        %917 = vmatpush1.msra.mxu0 0.0
        %918 = vmatprep.subr.mxu0 0.0
        %919 = vmatpush1.msra.mxu0 0.0
        %920 = vmatprep.subr.mxu0 0.0
        %921 = vmatpush1.msra.mxu0 0.0
        %922 = vmatprep.subr.mxu0 0.0
        %923 = vmatpush1.msra.mxu0 0.0
        %924 = vmatprep.subr.mxu0 0.0
        %925 = vmatpush1.msra.mxu0 0.0
        %926 = vmatprep.subr.mxu0 0.0
        %927 = vmatpush1.msra.mxu0 0.0
        %928 = vmatprep.subr.mxu0 0.0
        %929 = vmatpush1.msra.mxu0 0.0
        %930 = vmatprep.subr.mxu0 0.0
        %931 = vmatpush1.msra.mxu0 0.0
        %932 = vmatprep.mubr.f32.mxu0 0.0
        %933 = vmatmul.mubr.f32.gmra.mrb[0].mxu0 %v594
        %v934 = vpop.f32.mrb[0].mxu0
        %v935 = vadd.f32 %v866, %v934
        %v936 = vpop.f32.mrb[0].mxu0
        %937 = vmatprep.mubr.f32.mxu0 0.0
        %938 = vmatmul.mubr.f32.gmra.mrb[0].mxu0 %v599
        %v939 = vpop.f32.mrb[0].mxu0
        %v940 = vadd.f32 %v866, %v939
        %v941 = vpop.f32.mrb[0].mxu0
        %942 = vmatprep.mubr.f32.mxu0 0.0
        %943 = vmatmul.mubr.f32.gmra.mrb[0].mxu0 %v675
        %v944 = vpop.f32.mrb[0].mxu0
        %v945 = vadd.f32 %v866, %v944
        %v946 = vpop.f32.mrb[0].mxu0
        %947 = vmatprep.mubr.f32.mxu0 0.0
        %948 = vmatmul.mubr.f32.gmra.mrb[0].mxu0 %v680
        %v949 = vpop.f32.mrb[0].mxu0
        %v950 = vadd.f32 %v866, %v949
        %v951 = vpop.f32.mrb[0].mxu0
        %952 = vmatprep.mubr.f32.mxu0 0.0
        %953 = vmatmul.mubr.f32.gmra.mrb[0].mxu0 %v756
        %v954 = vpop.f32.mrb[0].mxu0
        %v955 = vadd.f32 %v866, %v954
        %v956 = vpop.f32.mrb[0].mxu0
        %957 = vmatprep.mubr.f32.mxu0 0.0
        %958 = vmatmul.mubr.f32.gmra.mrb[0].mxu0 %v761
        %v959 = vpop.f32.mrb[0].mxu0
        %v960 = vadd.f32 %v866, %v959
        %v961 = vpop.f32.mrb[0].mxu0
        %962 = vmatprep.mubr.f32.mxu0 0.0
        %963 = vmatmul.mubr.f32.gmra.mrb[0].mxu0 %v837
        %v964 = vpop.f32.mrb[0].mxu0
        %v965 = vadd.f32 %v866, %v964
        %v966 = vpop.f32.mrb[0].mxu0
        %967 = vmatprep.mubr.f32.mxu0 0.0
        %968 = vmatmul.mubr.f32.gmra.mrb[0].mxu0 %v842
        %v969 = vpop.f32.mrb[0].mxu0
        %v970 = vadd.f32 %v866, %v969
        %v971 = vpop.f32.mrb[0].mxu0
        %972 = vdwg.mxu0
        %v973 = vmax.f32 %v935, 0.0
        %v974 = vmax.f32 %v940, 0.0
        %v975 = vmax.f32 %v945, 0.0
        %v976 = vmax.f32 %v950, 0.0
        %v977 = vmax.f32 %v955, 0.0
        %v978 = vmax.f32 %v960, 0.0
        %v979 = vmax.f32 %v965, 0.0
        %v980 = vmax.f32 %v970, 0.0
        %v981 = vld [vmem:[#allocation7] sm:$0xff]
        %v982 = vld [vmem:[#allocation7 + $0x8] sm:$0xff]
        %v983 = vld [vmem:[#allocation7 + $0x10] sm:$0xff]
        %v984 = vld [vmem:[#allocation7 + $0x18] sm:$0xff]
        %v985 = vld [vmem:[#allocation7 + $0x20] sm:$0xff]
        %v986 = vld [vmem:[#allocation7 + $0x28] sm:$0xff]
        %v987 = vld [vmem:[#allocation7 + $0x30] sm:$0xff]
        %v988 = vld [vmem:[#allocation7 + $0x38] sm:$0xff]
        %v989 = vld [vmem:[#allocation7 + $0x40] sm:$0xff]
        %v990 = vld [vmem:[#allocation7 + $0x48] sm:$0xff]
        %v991 = vld [vmem:[#allocation7 + $0x50] sm:$0xff]
        %v992 = vld [vmem:[#allocation7 + $0x58] sm:$0xff]
        %v993 = vld [vmem:[#allocation7 + $0x60] sm:$0xff]
        %v994 = vld [vmem:[#allocation7 + $0x68] sm:$0xff]
        %v995 = vld [vmem:[#allocation7 + $0x70] sm:$0xff]
        %v996 = vld [vmem:[#allocation7 + $0x78] sm:$0xff]
        %v997 = vld [vmem:[%s6] sm:$0x1]
        %v999 = vlaneseq
        %v1000 = vshrl.u32 %v999, 7
        %v1001 = vsub.s32 0, %v1000
        %v1002 = vrot.slane %v997, %v1001
        %1004 = vmatprep.subr.mxu0 0.0
        %1005 = vmatpush1.msra.mxu0 %v981
        %1006 = vmatprep.subr.mxu0 0.0
        %1007 = vmatpush1.msra.mxu0 %v982
        %1008 = vmatprep.subr.mxu0 0.0
        %1009 = vmatpush1.msra.mxu0 %v983
        %1010 = vmatprep.subr.mxu0 0.0
        %1011 = vmatpush1.msra.mxu0 %v984
        %1012 = vmatprep.subr.mxu0 0.0
        %1013 = vmatpush1.msra.mxu0 %v985
        %1014 = vmatprep.subr.mxu0 0.0
        %1015 = vmatpush1.msra.mxu0 %v986
        %1016 = vmatprep.subr.mxu0 0.0
        %1017 = vmatpush1.msra.mxu0 %v987
        %1018 = vmatprep.subr.mxu0 0.0
        %1019 = vmatpush1.msra.mxu0 %v988
        %1020 = vmatprep.subr.mxu0 0.0
        %1021 = vmatpush1.msra.mxu0 %v989
        %1022 = vmatprep.subr.mxu0 0.0
        %1023 = vmatpush1.msra.mxu0 %v990
        %1024 = vmatprep.subr.mxu0 0.0
        %1025 = vmatpush1.msra.mxu0 %v991
        %1026 = vmatprep.subr.mxu0 0.0
        %1027 = vmatpush1.msra.mxu0 %v992
        %1028 = vmatprep.subr.mxu0 0.0
        %1029 = vmatpush1.msra.mxu0 %v993
        %1030 = vmatprep.subr.mxu0 0.0
        %1031 = vmatpush1.msra.mxu0 %v994
        %1032 = vmatprep.subr.mxu0 0.0
        %1033 = vmatpush1.msra.mxu0 %v995
        %1034 = vmatprep.subr.mxu0 0.0
        %1035 = vmatpush1.msra.mxu0 %v996
        %1036 = vmatprep.subr.mxu0 0.0
        %1037 = vmatpush1.msra.mxu0 0.0
        %1038 = vmatprep.subr.mxu0 0.0
        %1039 = vmatpush1.msra.mxu0 0.0
        %1040 = vmatprep.subr.mxu0 0.0
        %1041 = vmatpush1.msra.mxu0 0.0
        %1042 = vmatprep.subr.mxu0 0.0
        %1043 = vmatpush1.msra.mxu0 0.0
        %1044 = vmatprep.subr.mxu0 0.0
        %1045 = vmatpush1.msra.mxu0 0.0
        %1046 = vmatprep.subr.mxu0 0.0
        %1047 = vmatpush1.msra.mxu0 0.0
        %1048 = vmatprep.subr.mxu0 0.0
        %1049 = vmatpush1.msra.mxu0 0.0
        %1050 = vmatprep.subr.mxu0 0.0
        %1051 = vmatpush1.msra.mxu0 0.0
        %1052 = vmatprep.subr.mxu0 0.0
        %1053 = vmatpush1.msra.mxu0 0.0
        %1054 = vmatprep.subr.mxu0 0.0
        %1055 = vmatpush1.msra.mxu0 0.0
        %1056 = vmatprep.subr.mxu0 0.0
        %1057 = vmatpush1.msra.mxu0 0.0
        %1058 = vmatprep.subr.mxu0 0.0
        %1059 = vmatpush1.msra.mxu0 0.0
        %1060 = vmatprep.subr.mxu0 0.0
        %1061 = vmatpush1.msra.mxu0 0.0
        %1062 = vmatprep.subr.mxu0 0.0
        %1063 = vmatpush1.msra.mxu0 0.0
        %1064 = vmatprep.subr.mxu0 0.0
        %1065 = vmatpush1.msra.mxu0 0.0
        %1066 = vmatprep.subr.mxu0 0.0
        %1067 = vmatpush1.msra.mxu0 0.0
        %1068 = vmatprep.mubr.f32.mxu0 0.0
        %1069 = vmatmul.mubr.f32.gmra.mrb[0].mxu0 %v973
        %v1070 = vpop.f32.mrb[0].mxu0
        %v1071 = vadd.f32 %v1002, %v1070
        %v1072 = vpop.f32.mrb[0].mxu0
        %1073 = vmatprep.mubr.f32.mxu0 0.0
        %1074 = vmatmul.mubr.f32.gmra.mrb[0].mxu0 %v974
        %v1075 = vpop.f32.mrb[0].mxu0
        %v1076 = vadd.f32 %v1002, %v1075
        %v1077 = vpop.f32.mrb[0].mxu0
        %1078 = vmatprep.mubr.f32.mxu0 0.0
        %1079 = vmatmul.mubr.f32.gmra.mrb[0].mxu0 %v975
        %v1080 = vpop.f32.mrb[0].mxu0
        %v1081 = vadd.f32 %v1002, %v1080
        %v1082 = vpop.f32.mrb[0].mxu0
        %1083 = vmatprep.mubr.f32.mxu0 0.0
        %1084 = vmatmul.mubr.f32.gmra.mrb[0].mxu0 %v976
        %v1085 = vpop.f32.mrb[0].mxu0
        %v1086 = vadd.f32 %v1002, %v1085
        %v1087 = vpop.f32.mrb[0].mxu0
        %1088 = vmatprep.mubr.f32.mxu0 0.0
        %1089 = vmatmul.mubr.f32.gmra.mrb[0].mxu0 %v977
        %v1090 = vpop.f32.mrb[0].mxu0
        %v1091 = vadd.f32 %v1002, %v1090
        %v1092 = vpop.f32.mrb[0].mxu0
        %1093 = vmatprep.mubr.f32.mxu0 0.0
        %1094 = vmatmul.mubr.f32.gmra.mrb[0].mxu0 %v978
        %v1095 = vpop.f32.mrb[0].mxu0
        %v1096 = vadd.f32 %v1002, %v1095
        %v1097 = vpop.f32.mrb[0].mxu0
        %1098 = vmatprep.mubr.f32.mxu0 0.0
        %1099 = vmatmul.mubr.f32.gmra.mrb[0].mxu0 %v979
        %v1100 = vpop.f32.mrb[0].mxu0
        %v1101 = vadd.f32 %v1002, %v1100
        %v1102 = vpop.f32.mrb[0].mxu0
        %1103 = vmatprep.mubr.f32.mxu0 0.0
        %1104 = vmatmul.mubr.f32.gmra.mrb[0].mxu0 %v980
        %v1105 = vpop.f32.mrb[0].mxu0
        %v1106 = vadd.f32 %v1002, %v1105
        %v1107 = vpop.f32.mrb[0].mxu0
        %1108 = vdwg.mxu0
        %v1109 = vmax.f32 %v1071, 0.0
        %v1110 = vmax.f32 %v1076, 0.0
        %v1111 = vmax.f32 %v1081, 0.0
        %v1112 = vmax.f32 %v1086, 0.0
        %v1113 = vmax.f32 %v1091, 0.0
        %v1114 = vmax.f32 %v1096, 0.0
        %v1115 = vmax.f32 %v1101, 0.0
        %v1116 = vmax.f32 %v1106, 0.0
        %v1117 = vld [vmem:[#allocation8] sm:$0xff]
        %v1118 = vld [vmem:[#allocation8 + $0x8] sm:$0xff]
        %v1119 = vld [vmem:[#allocation8 + $0x10] sm:$0xff]
        %v1120 = vld [vmem:[#allocation8 + $0x18] sm:$0xff]
        %v1121 = vld [vmem:[#allocation8 + $0x20] sm:$0xff]
        %v1122 = vld [vmem:[#allocation8 + $0x28] sm:$0xff]
        %v1123 = vld [vmem:[#allocation8 + $0x30] sm:$0xff]
        %v1124 = vld [vmem:[#allocation8 + $0x38] sm:$0xff]
        %v1125 = vld [vmem:[#allocation8 + $0x40] sm:$0xff]
        %v1126 = vld [vmem:[#allocation8 + $0x48] sm:$0xff]
        %v1127 = vld [vmem:[#allocation8 + $0x50] sm:$0xff]
        %v1128 = vld [vmem:[#allocation8 + $0x58] sm:$0xff]
        %v1129 = vld [vmem:[#allocation8 + $0x60] sm:$0xff]
        %v1130 = vld [vmem:[#allocation8 + $0x68] sm:$0xff]
        %v1131 = vld [vmem:[#allocation8 + $0x70] sm:$0xff]
        %v1132 = vld [vmem:[#allocation8 + $0x78] sm:$0xff]
        %v1133 = vld [vmem:[%s8] sm:$0x1]
        %v1135 = vlaneseq
        %v1136 = vshrl.u32 %v1135, 7
        %v1137 = vsub.s32 0, %v1136
        %v1138 = vrot.slane %v1133, %v1137
        %1140 = vmatprep.subr.mxu0 0.0
        %1141 = vmatpush1.msra.mxu0 %v1117
        %1142 = vmatprep.subr.mxu0 0.0
        %1143 = vmatpush1.msra.mxu0 %v1118
        %1144 = vmatprep.subr.mxu0 0.0
        %1145 = vmatpush1.msra.mxu0 %v1119
        %1146 = vmatprep.subr.mxu0 0.0
        %1147 = vmatpush1.msra.mxu0 %v1120
        %1148 = vmatprep.subr.mxu0 0.0
        %1149 = vmatpush1.msra.mxu0 %v1121
        %1150 = vmatprep.subr.mxu0 0.0
        %1151 = vmatpush1.msra.mxu0 %v1122
        %1152 = vmatprep.subr.mxu0 0.0
        %1153 = vmatpush1.msra.mxu0 %v1123
        %1154 = vmatprep.subr.mxu0 0.0
        %1155 = vmatpush1.msra.mxu0 %v1124
        %1156 = vmatprep.subr.mxu0 0.0
        %1157 = vmatpush1.msra.mxu0 %v1125
        %1158 = vmatprep.subr.mxu0 0.0
        %1159 = vmatpush1.msra.mxu0 %v1126
        %1160 = vmatprep.subr.mxu0 0.0
        %1161 = vmatpush1.msra.mxu0 %v1127
        %1162 = vmatprep.subr.mxu0 0.0
        %1163 = vmatpush1.msra.mxu0 %v1128
        %1164 = vmatprep.subr.mxu0 0.0
        %1165 = vmatpush1.msra.mxu0 %v1129
        %1166 = vmatprep.subr.mxu0 0.0
        %1167 = vmatpush1.msra.mxu0 %v1130
        %1168 = vmatprep.subr.mxu0 0.0
        %1169 = vmatpush1.msra.mxu0 %v1131
        %1170 = vmatprep.subr.mxu0 0.0
        %1171 = vmatpush1.msra.mxu0 %v1132
        %1172 = vmatprep.subr.mxu0 0.0
        %1173 = vmatpush1.msra.mxu0 0.0
        %1174 = vmatprep.subr.mxu0 0.0
        %1175 = vmatpush1.msra.mxu0 0.0
        %1176 = vmatprep.subr.mxu0 0.0
        %1177 = vmatpush1.msra.mxu0 0.0
        %1178 = vmatprep.subr.mxu0 0.0
        %1179 = vmatpush1.msra.mxu0 0.0
        %1180 = vmatprep.subr.mxu0 0.0
        %1181 = vmatpush1.msra.mxu0 0.0
        %1182 = vmatprep.subr.mxu0 0.0
        %1183 = vmatpush1.msra.mxu0 0.0
        %1184 = vmatprep.subr.mxu0 0.0
        %1185 = vmatpush1.msra.mxu0 0.0
        %1186 = vmatprep.subr.mxu0 0.0
        %1187 = vmatpush1.msra.mxu0 0.0
        %1188 = vmatprep.subr.mxu0 0.0
        %1189 = vmatpush1.msra.mxu0 0.0
        %1190 = vmatprep.subr.mxu0 0.0
        %1191 = vmatpush1.msra.mxu0 0.0
        %1192 = vmatprep.subr.mxu0 0.0
        %1193 = vmatpush1.msra.mxu0 0.0
        %1194 = vmatprep.subr.mxu0 0.0
        %1195 = vmatpush1.msra.mxu0 0.0
        %1196 = vmatprep.subr.mxu0 0.0
        %1197 = vmatpush1.msra.mxu0 0.0
        %1198 = vmatprep.subr.mxu0 0.0
        %1199 = vmatpush1.msra.mxu0 0.0
        %1200 = vmatprep.subr.mxu0 0.0
        %1201 = vmatpush1.msra.mxu0 0.0
        %1202 = vmatprep.subr.mxu0 0.0
        %1203 = vmatpush1.msra.mxu0 0.0
        %1204 = vmatprep.mubr.f32.mxu0 0.0
        %1205 = vmatmul.mubr.f32.gmra.mrb[0].mxu0 %v1109
        %v1206 = vpop.f32.mrb[0].mxu0
        %v1207 = vadd.f32 %v1138, %v1206
        %v1208 = vpop.f32.mrb[0].mxu0
        %1209 = vmatprep.mubr.f32.mxu0 0.0
        %1210 = vmatmul.mubr.f32.gmra.mrb[0].mxu0 %v1110
        %v1211 = vpop.f32.mrb[0].mxu0
        %v1212 = vadd.f32 %v1138, %v1211
        %v1213 = vpop.f32.mrb[0].mxu0
        %1214 = vmatprep.mubr.f32.mxu0 0.0
        %1215 = vmatmul.mubr.f32.gmra.mrb[0].mxu0 %v1111
        %v1216 = vpop.f32.mrb[0].mxu0
        %v1217 = vadd.f32 %v1138, %v1216
        %v1218 = vpop.f32.mrb[0].mxu0
        %1219 = vmatprep.mubr.f32.mxu0 0.0
        %1220 = vmatmul.mubr.f32.gmra.mrb[0].mxu0 %v1112
        %v1221 = vpop.f32.mrb[0].mxu0
        %v1222 = vadd.f32 %v1138, %v1221
        %v1223 = vpop.f32.mrb[0].mxu0
        %1224 = vmatprep.mubr.f32.mxu0 0.0
        %1225 = vmatmul.mubr.f32.gmra.mrb[0].mxu0 %v1113
        %v1226 = vpop.f32.mrb[0].mxu0
        %v1227 = vadd.f32 %v1138, %v1226
        %v1228 = vpop.f32.mrb[0].mxu0
        %1229 = vmatprep.mubr.f32.mxu0 0.0
        %1230 = vmatmul.mubr.f32.gmra.mrb[0].mxu0 %v1114
        %v1231 = vpop.f32.mrb[0].mxu0
        %v1232 = vadd.f32 %v1138, %v1231
        %v1233 = vpop.f32.mrb[0].mxu0
        %1234 = vmatprep.mubr.f32.mxu0 0.0
        %1235 = vmatmul.mubr.f32.gmra.mrb[0].mxu0 %v1115
        %v1236 = vpop.f32.mrb[0].mxu0
        %v1237 = vadd.f32 %v1138, %v1236
        %v1238 = vpop.f32.mrb[0].mxu0
        %1239 = vmatprep.mubr.f32.mxu0 0.0
        %1240 = vmatmul.mubr.f32.gmra.mrb[0].mxu0 %v1116
        %v1241 = vpop.f32.mrb[0].mxu0
        %v1242 = vadd.f32 %v1138, %v1241
        %v1243 = vpop.f32.mrb[0].mxu0
        %1244 = vdwg.mxu0
        %v1245 = vmax.f32 %v1207, 0.0
        %v1246 = vmax.f32 %v1212, 0.0
        %v1247 = vmax.f32 %v1217, 0.0
        %v1248 = vmax.f32 %v1222, 0.0
        %v1249 = vmax.f32 %v1227, 0.0
        %v1250 = vmax.f32 %v1232, 0.0
        %v1251 = vmax.f32 %v1237, 0.0
        %v1252 = vmax.f32 %v1242, 0.0
        %1253 = vst [vmem:[%s431] sm:$0xff] %v1245
        %1254 = vst [vmem:[%s431 + $0x8] sm:$0xff] %v1246
        %1255 = vst [vmem:[%s431 + $0x10] sm:$0xff] %v1247
        %1256 = vst [vmem:[%s431 + $0x18] sm:$0xff] %v1248
        %1257 = vst [vmem:[%s431 + $0x20] sm:$0xff] %v1249
        %1258 = vst [vmem:[%s431 + $0x28] sm:$0xff] %v1250
        %1259 = vst [vmem:[%s431 + $0x30] sm:$0xff] %v1251
        %1260 = vst [vmem:[%s431 + $0x38] sm:$0xff] %v1252
        %s1261 = sand.u32 %s240, 1
        %s1262 = scalar_lea.sflag [#allocation4], %s1261
        %s1263 = sand.u32 %s240, 1
        %s1264 = smul.addr %s1263, 64
        %s1265 = scalar_lea.vmem [#allocation10], %s1264
        // Predicated region
        $region73: #{tpu_custom_call.1} parent=55 // pred_check
          %p1266 = pneg %p250
        $region74: #{tpu_custom_call.1} parent=55 // pred_check_branch
          %1268 = sbr.rel (%p1266) target = $region76
        $region75: #{tpu_custom_call.1} parent=55 // pred_region
          %s1269 = smul.u32 4, %s28
          %s1271 = ssub.s32 1024, 1024
          %1272 = vsyncadd %s1262, %s1271
          %s1273 = smul.addr %s1269, 2
          %s1274 = smul.addr %s1273, 128
          %s1275 = scalar_lea.hbm %s9, %s1274
          %s1276 = sshll.u32 %s1265, 4
          %s1277 = int_to_ptr.vmem [resolvable:$true] %s1276
          %1282 = dma.vmem_to_hbm [thread:$0]  %s1277, 1024, %s1275, %s1262, 128, 128, 8
        $region76: #{tpu_custom_call.1} parent=55 // pred_fallthru
          _
      $region56: #{tpu_custom_call.1} parent=5 // pred_fallthru
        _
      %p1283 = scmp.le.s32.totalorder 2, %s23
      // Predicated region
      $region77: #{tpu_custom_call.1} parent=5 // pred_check
        %p1284 = pneg %p1283
      $region78: #{tpu_custom_call.1} parent=5 // pred_check_branch
        %1286 = sbr.rel (%p1284) target = $region80
      $region79: #{tpu_custom_call.1} parent=5 // pred_region
        %s1287 = ssub.s32 %s23, 2
        // Predicated region
        $region81: #{tpu_custom_call.1} parent=79 // pred_check
          %p1288 = pneg %p256
        $region82: #{tpu_custom_call.1} parent=79 // pred_check_branch
          %1290 = sbr.rel (%p1288) target = $region84
        $region83: #{tpu_custom_call.1} parent=79 // pred_region
          %s1291 = sand.u32 %s241, 1
          %s1292 = scalar_lea.sflag [#allocation4], %s1291
          %s1293 = sand.u32 %s241, 1
          %s1294 = smul.addr %s1293, 64
          %s1295 = scalar_lea.vmem [#allocation10], %s1294
          %1296 = dma.done %s1292, 1024
        $region84: #{tpu_custom_call.1} parent=79 // pred_fallthru
          _
      $region80: #{tpu_custom_call.1} parent=5 // pred_fallthru
        _
    $region6: #{tpu_custom_call.1} parent=1 // loop_footer
      %s27 = sadd.s32 1, %s23
    $region7: #{tpu_custom_call.1} parent=1 // loop_footer_branch
      %22 = sbr.rel target = $region3
    $region8: #{tpu_custom_call.1} parent=1 // loop_exit
      _
    %1297 = vsyncpa [#allocation3], 1
    %s1298 = scalar_lea.sflag [#allocation3], 1
    %1299 = vsyncpa %s1298, 1
    %1300 = vsyncpa [#allocation6], 1
    %1301 = vsyncpa [#allocation9], 1
    %1302 = vsyncpa [#allocation4], 1
    %s1303 = scalar_lea.sflag [#allocation4], 1
    %1304 = vsyncpa %s1303, 1

</llo_original>
